<compile_context>
chip_gen: v5e
topology: v5e:2x2
jax: 0.10.0
libtpu: 0.0.40
codegen_flags: <defaults>
</compile_context>

<pallas_src>
import jax
import jax.numpy as jnp
from jax.experimental import pallas as pl
from jax.experimental.pallas import tpu as pltpu


def _round_up(n, m):
    return ((n + m - 1) // m) * m


def sae_kernel(x_ref,
               w1_ref, b1_ref,
               w2_ref, b2_ref,
               w3_ref, b3_ref,
               w4_ref, b4_ref,
               o_ref):
    # fc1 -> sigmoid
    x = x_ref[...]
    h = jax.nn.sigmoid(
        jnp.dot(x, w1_ref[...], preferred_element_type=jnp.float32) + b1_ref[...])
    # fc2 -> sigmoid
    h = jax.nn.sigmoid(
        jnp.dot(h, w2_ref[...], preferred_element_type=jnp.float32) + b2_ref[...])
    # fc3 -> sigmoid
    h = jax.nn.sigmoid(
        jnp.dot(h, w3_ref[...], preferred_element_type=jnp.float32) + b3_ref[...])
    # fc4 (no activation)
    out = jnp.dot(h, w4_ref[...], preferred_element_type=jnp.float32) + b4_ref[...]
    o_ref[...] = out.astype(o_ref.dtype)


def sae_forward(x, params, *, tm=None):
    """SAE forward pass.  x: (B, nb_movies) float32."""
    (w1, b1), (w2, b2), (w3, b3), (w4, b4) = params
    B, F = x.shape                      # F == nb_movies
    H1 = w1.shape[0]                    # 20
    H2 = w2.shape[0]                    # 10
    H3 = w3.shape[0]                    # 20

    # Pre-transposed weights / row-shaped biases (tiny, one-time ops; the big
    # (B, F) input/output arrays are passed through untouched).
    w1t = w1.T                           # (F, 20)
    w2t = w2.T                           # (20, 10)
    w3t = w3.T                           # (10, 20)
    w4t = w4.T                           # (20, F)
    b1r = b1.reshape(1, -1)
    b2r = b2.reshape(1, -1)
    b3r = b3.reshape(1, -1)
    b4r = b4.reshape(1, -1)

    # ---- chip-aware VMEM budget --------------------------------------------
    try:
        vmem_cap = int(pltpu.get_tpu_info().vmem_capacity_bytes)
    except Exception:
        vmem_cap = 64 * 1024 * 1024      # conservative: v7x per-TC VMEM

    row_bytes = F * 4                    # one f32 row of x / out
    # Weights + biases are grid-invariant but (by default) double-buffered.
    weight_bytes = 2 * 4 * int(w1t.size + w2t.size + w3t.size + w4t.size
                               + b1r.size + b2r.size + b3r.size + b4r.size)
    slack = 2 * 1024 * 1024
    # Live set ~= 5 * tm * row_bytes:
    #   x tile (2 buffers) + out tile (2 buffers) + fc4 f32 result temp.
    tile_budget = max(int(vmem_cap * 0.6) - weight_bytes - slack,
                      5 * 8 * row_bytes)

    if tm is None:
        tm_target = (8 * 1024 * 1024) // row_bytes     # ~8 MiB per (tm, F) array
        tm_budget = tile_budget // (5 * row_bytes)
        tm = min(tm_target, tm_budget, _round_up(B, 8))
        if B >= 16:
            # >= 2 grid steps so both v7x TensorCores get work.
            tm = min(tm, _round_up(pl.cdiv(B, 2), 8))
        tm = max(8, (tm // 8) * 8)

    grid = (pl.cdiv(B, tm),)             # batch remainder handled by Pallas
                                         # (masked partial last block).

    live_bytes = 5 * tm * row_bytes + weight_bytes + slack
    vmem_limit = int(min(vmem_cap - 8 * 1024 * 1024,
                         max(32 * 1024 * 1024, live_bytes)))

    def full_spec(shape):
        return pl.BlockSpec(shape, lambda i: (0, 0))

    cost = pl.CostEstimate(
        flops=int(2 * B * (F * H1 + H1 * H2 + H2 * H3 + H3 * F)),
        transcendentals=int(B * (H1 + H2 + H3)),
        bytes_accessed=int(2 * B * F * 4 + weight_bytes // 2),
    )

    out = pl.pallas_call(
        sae_kernel,
        out_shape=jax.ShapeDtypeStruct((B, F), x.dtype),
        grid_spec=pltpu.PrefetchScalarGridSpec(
            num_scalar_prefetch=0,
            grid=grid,
            in_specs=[
                pl.BlockSpec((tm, F), lambda i: (i, 0)),   # x batch tile
                full_spec(w1t.shape), full_spec(b1r.shape),
                full_spec(w2t.shape), full_spec(b2r.shape),
                full_spec(w3t.shape), full_spec(b3r.shape),
                full_spec(w4t.shape), full_spec(b4r.shape),
            ],
            out_specs=pl.BlockSpec((tm, F), lambda i: (i, 0)),
        ),
        compiler_params=pltpu.CompilerParams(
            dimension_semantics=("parallel",),
            vmem_limit_bytes=vmem_limit,
        ),
        cost_estimate=cost,
    )(x, w1t, b1r, w2t, b2r, w3t, b3r, w4t, b4r)
    return out


def init_linear(key, out_features, in_features):
    """Deterministic PyTorch-style uniform(-1/sqrt(in), 1/sqrt(in)) init."""
    kw, kb = jax.random.split(key)
    bound = 1.0 / jnp.sqrt(jnp.float32(in_features))
    w = jax.random.uniform(kw, (out_features, in_features), jnp.float32,
                           minval=-bound, maxval=bound)
    b = jax.random.uniform(kb, (out_features,), jnp.float32,
                           minval=-bound, maxval=bound)
    return w, b


def sae_reference(x, params):
    (w1, b1), (w2, b2), (w3, b3), (w4, b4) = params
    h = jax.nn.sigmoid(x @ w1.T + b1)
    h = jax.nn.sigmoid(h @ w2.T + b2)
    h = jax.nn.sigmoid(h @ w3.T + b3)
    return h @ w4.T + b4


if __name__ == "__main__":
    # Small synthetic shapes consistent with the module: nb_movies is the
    # input/output feature dim (non-multiple of 128 to exercise the
    # full-dim / masked-lane path); hidden dims are 20 and 10 (from __init__).
    nb_movies = 100
    batch = 32

    root = jax.random.PRNGKey(0)
    kx, k1, k2, k3, k4 = jax.random.split(root, 5)

    params = (
        init_linear(k1, 20, nb_movies),   # fc1
        init_linear(k2, 10, 20),          # fc2
        init_linear(k3, 20, 10),          # fc3
        init_linear(k4, nb_movies, 20),   # fc4
    )

    # Ratings-like input in [0, 5].
    x = jax.random.uniform(kx, (batch, nb_movies), jnp.float32,
                           minval=0.0, maxval=5.0)

    out = sae_forward(x, params)
    out = jax.block_until_ready(out)

    ref = sae_reference(x, params)
    assert out.shape == (batch, nb_movies)
    assert jnp.allclose(out, ref, atol=1e-5, rtol=1e-5), "mismatch vs reference"

    print("KERNEL_OK")
</pallas_src>

<mosaic_0001>
module attributes {stable_mosaic.version = 11 : i64} {
  func.func @sae_kernel(%arg0: i32, %arg1: memref<16x100xf32, #tpu.memory_space<vmem>>, %arg2: memref<100x20xf32, #tpu.memory_space<vmem>>, %arg3: memref<1x20xf32, #tpu.memory_space<vmem>>, %arg4: memref<20x10xf32, #tpu.memory_space<vmem>>, %arg5: memref<1x10xf32, #tpu.memory_space<vmem>>, %arg6: memref<10x20xf32, #tpu.memory_space<vmem>>, %arg7: memref<1x20xf32, #tpu.memory_space<vmem>>, %arg8: memref<20x100xf32, #tpu.memory_space<vmem>>, %arg9: memref<1x100xf32, #tpu.memory_space<vmem>>, %arg10: memref<16x100xf32, #tpu.memory_space<vmem>>) attributes {dimension_semantics = [#tpu.dimension_semantics<parallel>], iteration_bounds = array<i64: 2>, scalar_prefetch = 0 : i64, scratch_operands = 0 : i64, tpu.core_type = #tpu.core_type<tc>, window_params = [{transform_indices = @transform_0, window_bounds = array<i64: 16, 100>}, {pipeline_mode = #tpu.pipeline_mode<synchronous>, transform_indices = @transform_1, window_bounds = array<i64: 100, 20>}, {pipeline_mode = #tpu.pipeline_mode<synchronous>, transform_indices = @transform_2, window_bounds = array<i64: 1, 20>}, {pipeline_mode = #tpu.pipeline_mode<synchronous>, transform_indices = @transform_3, window_bounds = array<i64: 20, 10>}, {pipeline_mode = #tpu.pipeline_mode<synchronous>, transform_indices = @transform_4, window_bounds = array<i64: 1, 10>}, {pipeline_mode = #tpu.pipeline_mode<synchronous>, transform_indices = @transform_5, window_bounds = array<i64: 10, 20>}, {pipeline_mode = #tpu.pipeline_mode<synchronous>, transform_indices = @transform_6, window_bounds = array<i64: 1, 20>}, {pipeline_mode = #tpu.pipeline_mode<synchronous>, transform_indices = @transform_7, window_bounds = array<i64: 20, 100>}, {pipeline_mode = #tpu.pipeline_mode<synchronous>, transform_indices = @transform_8, window_bounds = array<i64: 1, 100>}, {transform_indices = @transform_9, window_bounds = array<i64: 16, 100>}]} {
    %c0 = arith.constant 0 : index
    %c0_0 = arith.constant 0 : index
    %0 = vector.load %arg1[%c0, %c0_0] : memref<16x100xf32, #tpu.memory_space<vmem>>, vector<16x100xf32>
    %c0_1 = arith.constant 0 : index
    %c0_2 = arith.constant 0 : index
    %1 = vector.load %arg2[%c0_1, %c0_2] : memref<100x20xf32, #tpu.memory_space<vmem>>, vector<100x20xf32>
    %cst = arith.constant dense<0.000000e+00> : vector<16x20xf32>
    %2 = tpu.matmul %0, %1, %cst {dimension_numbers = #tpu.dot_dimension_numbers<[1], [0], [0], [1], [0, 0, 1, 1], [], []>} : vector<16x100xf32>, vector<100x20xf32>, vector<16x20xf32> -> vector<16x20xf32>
    %c0_3 = arith.constant 0 : index
    %c0_4 = arith.constant 0 : index
    %3 = vector.load %arg3[%c0_3, %c0_4] : memref<1x20xf32, #tpu.memory_space<vmem>>, vector<1x20xf32>
    %4 = vector.broadcast %3 : vector<1x20xf32> to vector<16x20xf32>
    %5 = arith.addf %2, %4 : vector<16x20xf32>
    %6 = arith.negf %5 : vector<16x20xf32>
    %7 = math.exp %6 : vector<16x20xf32>
    %cst_5 = arith.constant 1.000000e+00 : f32
    %8 = vector.broadcast %cst_5 : f32 to vector<16x20xf32>
    %9 = arith.addf %8, %7 : vector<16x20xf32>
    %10 = arith.divf %8, %9 : vector<16x20xf32>
    %c0_6 = arith.constant 0 : index
    %c0_7 = arith.constant 0 : index
    %11 = vector.load %arg4[%c0_6, %c0_7] : memref<20x10xf32, #tpu.memory_space<vmem>>, vector<20x10xf32>
    %cst_8 = arith.constant dense<0.000000e+00> : vector<16x10xf32>
    %12 = tpu.matmul %10, %11, %cst_8 {dimension_numbers = #tpu.dot_dimension_numbers<[1], [0], [0], [1], [0, 0, 1, 1], [], []>} : vector<16x20xf32>, vector<20x10xf32>, vector<16x10xf32> -> vector<16x10xf32>
    %c0_9 = arith.constant 0 : index
    %c0_10 = arith.constant 0 : index
    %13 = vector.load %arg5[%c0_9, %c0_10] : memref<1x10xf32, #tpu.memory_space<vmem>>, vector<1x10xf32>
    %14 = vector.broadcast %13 : vector<1x10xf32> to vector<16x10xf32>
    %15 = arith.addf %12, %14 : vector<16x10xf32>
    %16 = arith.negf %15 : vector<16x10xf32>
    %17 = math.exp %16 : vector<16x10xf32>
    %cst_11 = arith.constant 1.000000e+00 : f32
    %18 = vector.broadcast %cst_11 : f32 to vector<16x10xf32>
    %19 = arith.addf %18, %17 : vector<16x10xf32>
    %20 = arith.divf %18, %19 : vector<16x10xf32>
    %c0_12 = arith.constant 0 : index
    %c0_13 = arith.constant 0 : index
    %21 = vector.load %arg6[%c0_12, %c0_13] : memref<10x20xf32, #tpu.memory_space<vmem>>, vector<10x20xf32>
    %cst_14 = arith.constant dense<0.000000e+00> : vector<16x20xf32>
    %22 = tpu.matmul %20, %21, %cst_14 {dimension_numbers = #tpu.dot_dimension_numbers<[1], [0], [0], [1], [0, 0, 1, 1], [], []>} : vector<16x10xf32>, vector<10x20xf32>, vector<16x20xf32> -> vector<16x20xf32>
    %c0_15 = arith.constant 0 : index
    %c0_16 = arith.constant 0 : index
    %23 = vector.load %arg7[%c0_15, %c0_16] : memref<1x20xf32, #tpu.memory_space<vmem>>, vector<1x20xf32>
    %24 = vector.broadcast %23 : vector<1x20xf32> to vector<16x20xf32>
    %25 = arith.addf %22, %24 : vector<16x20xf32>
    %26 = arith.negf %25 : vector<16x20xf32>
    %27 = math.exp %26 : vector<16x20xf32>
    %cst_17 = arith.constant 1.000000e+00 : f32
    %28 = vector.broadcast %cst_17 : f32 to vector<16x20xf32>
    %29 = arith.addf %28, %27 : vector<16x20xf32>
    %30 = arith.divf %28, %29 : vector<16x20xf32>
    %c0_18 = arith.constant 0 : index
    %c0_19 = arith.constant 0 : index
    %31 = vector.load %arg8[%c0_18, %c0_19] : memref<20x100xf32, #tpu.memory_space<vmem>>, vector<20x100xf32>
    %cst_20 = arith.constant dense<0.000000e+00> : vector<16x100xf32>
    %32 = tpu.matmul %30, %31, %cst_20 {dimension_numbers = #tpu.dot_dimension_numbers<[1], [0], [0], [1], [0, 0, 1, 1], [], []>} : vector<16x20xf32>, vector<20x100xf32>, vector<16x100xf32> -> vector<16x100xf32>
    %c0_21 = arith.constant 0 : index
    %c0_22 = arith.constant 0 : index
    %33 = vector.load %arg9[%c0_21, %c0_22] : memref<1x100xf32, #tpu.memory_space<vmem>>, vector<1x100xf32>
    %34 = vector.broadcast %33 : vector<1x100xf32> to vector<16x100xf32>
    %35 = arith.addf %32, %34 : vector<16x100xf32>
    %c0_23 = arith.constant 0 : index
    %c0_24 = arith.constant 0 : index
    %36 = vector.load %arg10[%c0_23, %c0_24] : memref<16x100xf32, #tpu.memory_space<vmem>>, vector<16x100xf32>
    tpu.vector_store %arg10[%c0_23, %c0_24], %35 {strides = array<i32>} : memref<16x100xf32, #tpu.memory_space<vmem>>, vector<16x100xf32>,
    return
  }
  func.func @transform_0(%arg0: i32) -> (i32, i32) {
    %c0_i32 = arith.constant 0 : i32
    %c0_i32_0 = arith.constant 0 : i32
    return %arg0, %c0_i32 : i32, i32
  }
  func.func @transform_1(%arg0: i32) -> (i32, i32) {
    %c0_i32 = arith.constant 0 : i32
    %c0_i32_0 = arith.constant 0 : i32
    %c0_i32_1 = arith.constant 0 : i32
    return %c0_i32, %c0_i32_0 : i32, i32
  }
  func.func @transform_2(%arg0: i32) -> (i32, i32) {
    %c0_i32 = arith.constant 0 : i32
    %c0_i32_0 = arith.constant 0 : i32
    %c0_i32_1 = arith.constant 0 : i32
    return %c0_i32, %c0_i32_0 : i32, i32
  }
  func.func @transform_3(%arg0: i32) -> (i32, i32) {
    %c0_i32 = arith.constant 0 : i32
    %c0_i32_0 = arith.constant 0 : i32
    %c0_i32_1 = arith.constant 0 : i32
    return %c0_i32, %c0_i32_0 : i32, i32
  }
  func.func @transform_4(%arg0: i32) -> (i32, i32) {
    %c0_i32 = arith.constant 0 : i32
    %c0_i32_0 = arith.constant 0 : i32
    %c0_i32_1 = arith.constant 0 : i32
    return %c0_i32, %c0_i32_0 : i32, i32
  }
  func.func @transform_5(%arg0: i32) -> (i32, i32) {
    %c0_i32 = arith.constant 0 : i32
    %c0_i32_0 = arith.constant 0 : i32
    %c0_i32_1 = arith.constant 0 : i32
    return %c0_i32, %c0_i32_0 : i32, i32
  }
  func.func @transform_6(%arg0: i32) -> (i32, i32) {
    %c0_i32 = arith.constant 0 : i32
    %c0_i32_0 = arith.constant 0 : i32
    %c0_i32_1 = arith.constant 0 : i32
    return %c0_i32, %c0_i32_0 : i32, i32
  }
  func.func @transform_7(%arg0: i32) -> (i32, i32) {
    %c0_i32 = arith.constant 0 : i32
    %c0_i32_0 = arith.constant 0 : i32
    %c0_i32_1 = arith.constant 0 : i32
    return %c0_i32, %c0_i32_0 : i32, i32
  }
  func.func @transform_8(%arg0: i32) -> (i32, i32) {
    %c0_i32 = arith.constant 0 : i32
    %c0_i32_0 = arith.constant 0 : i32
    %c0_i32_1 = arith.constant 0 : i32
    return %c0_i32, %c0_i32_0 : i32, i32
  }
  func.func @transform_9(%arg0: i32) -> (i32, i32) {
    %c0_i32 = arith.constant 0 : i32
    %c0_i32_0 = arith.constant 0 : i32
    return %arg0, %c0_i32 : i32, i32
  }
}

</mosaic_0001>

<llo_original>
// kernel: tpu_custom_call.1
$region0: #{tpu_custom_call.1}
  #allocation0 [shape = 'u32[]', space=smem, size = 0x4, offset = 0x4, fixed_abs, tag = 'smem constant byte address 0x4 - core index']
  #allocation1 [shape = 'u32[72,128]{1,0:T(1,128)}', space=vmem, size = 0x9000, scoped, tag = 'internal scratch']
  %s0 = inlined_call_operand.vmem [shape: f32[32,100], index: 0, kind: input, shape index: {}]
  %s1 = inlined_call_operand.vmem [shape: f32[100,20], index: 1, kind: input, shape index: {}]
  %s2 = inlined_call_operand.vmem [shape: f32[1,20], index: 2, kind: input, shape index: {}]
  %s3 = inlined_call_operand.vmem [shape: f32[20,10], index: 3, kind: input, shape index: {}]
  %s4 = inlined_call_operand.vmem [shape: f32[1,10], index: 4, kind: input, shape index: {}]
  %s5 = inlined_call_operand.vmem [shape: f32[10,20], index: 5, kind: input, shape index: {}]
  %s6 = inlined_call_operand.vmem [shape: f32[1,20], index: 6, kind: input, shape index: {}]
  %s7 = inlined_call_operand.vmem [shape: f32[20,100], index: 7, kind: input, shape index: {}]
  %s8 = inlined_call_operand.vmem [shape: f32[1,100], index: 8, kind: input, shape index: {}]
  %s9 = inlined_call_operand.hbm [shape: f32[32,100], index: 9, kind: output, shape index: {}]
  %s10 = sld [smem:[#allocation0]]
  $region69: #{tpu_custom_call.1} parent=0
    _
  %s12 = ssub.s32 1, %s10
  %s13 = scalar_select 0, %s12, %s10
  $region1: #{tpu_custom_call.1} parent=0
    #allocation2 [shape = 'u8[16384]{0}', space=vmem, size = 0x4000, scoped, tag = 'output window, operand 0']
    #allocation3 [shape = 's32[2]{0}', space=sflag, size = 0x8, scoped, tag = 'scoped memory for tpu_custom_call.1']
    %14 = vsyncpa [#allocation3], 0
    %s15 = scalar_lea.sflag [#allocation3], 1
    %16 = vsyncpa %s15, 0
    loop: start=0, step=1, limit=4
    $region2: #{tpu_custom_call.1} parent=1 // loop_pre_header
      _
    $region3: #{tpu_custom_call.1} parent=1 // loop_header
      %s18 = sphi 0, %s22
      %p19 = scmp.ge.s32.totalorder %s18, 4
      %s28 = sphi 0, %s30
      %s31 = sphi 0, %s28
      %s32 = sphi 0, %s31
      %s48 = sphi 0, %s32
      %s52 = sphi 0, %s52
      %s54 = sphi 0, %s52
      %s55 = sphi 0, %s54
      %s69 = sphi 0, %s55
      %s73 = sphi 0, %s73
      %s75 = sphi 0, %s73
      %s76 = sphi 0, %s75
      %s90 = sphi 0, %s76
      %s94 = sphi 0, %s94
      %s96 = sphi 0, %s94
      %s97 = sphi 0, %s96
      %s111 = sphi 0, %s97
      %s115 = sphi 0, %s115
      %s117 = sphi 0, %s115
      %s118 = sphi 0, %s117
      %s132 = sphi 0, %s118
      %s136 = sphi 0, %s136
      %s138 = sphi 0, %s136
      %s139 = sphi 0, %s138
      %s153 = sphi 0, %s139
      %s157 = sphi 0, %s157
      %s159 = sphi 0, %s157
      %s160 = sphi 0, %s159
      %s174 = sphi 0, %s160
      %s178 = sphi 0, %s178
      %s180 = sphi 0, %s178
      %s181 = sphi 0, %s180
      %s195 = sphi 0, %s181
      %s199 = sphi 0, %s199
      %s201 = sphi 0, %s199
      %s202 = sphi 0, %s201
      %s216 = sphi 0, %s202
      %s222 = sphi 0, %s224
      %s225 = sphi 0, %s222
      %s226 = sphi 0, %s225
      %s242 = sphi 0, %s226
    $region4: #{tpu_custom_call.1} parent=1 // loop_header_branch
      %21 = sbr.rel (%p19) target = $region8
    $region5: #{tpu_custom_call.1} parent=1 // loop_body
      %s23 = ssub.s32 %s18, 1
      %s24 = ssub.s32 %s18, 2
      %s25 = sadd.s32 %s18, 1
      %s26 = ssub.s32 %s18, %s25
      %p27 = scmp.eq.s32.totalorder %s26, 0
      %s29 = sadd.s32 %s28, 1
      %s30 = scalar_select %p27, %s28, %s29
      %p33 = pneg %p27
      %p34 = scmp.eq.s32.totalorder %s18, 1
      %p35 = por %p33, %p34
      %p36 = scmp.ne.s32.totalorder %s28, %s31
      %p37 = scmp.eq.s32.totalorder %s18, 0
      %p38 = por %p36, %p37
      %p39 = scmp.ne.s32.totalorder %s28, %s31
      %p40 = scmp.eq.s32.totalorder %s23, 1
      %p41 = por %p39, %p40
      %p42 = scmp.ne.s32.totalorder %s31, %s32
      %p43 = scmp.eq.s32.totalorder %s23, 0
      %p44 = por %p42, %p43
      %p45 = scmp.ne.s32.totalorder %s31, %s32
      %p46 = scmp.eq.s32.totalorder %s24, 1
      %p47 = por %p45, %p46
      %p49 = scmp.ne.s32.totalorder %s32, %s48
      %p50 = scmp.eq.s32.totalorder %s24, 0
      %p51 = por %p49, %p50
      %s53 = sadd.s32 %s52, 1
      %p56 = scmp.eq.s32.totalorder %s18, 1
      %p57 = scmp.ne.s32.totalorder %s52, %s54
      %p58 = scmp.eq.s32.totalorder %s18, 0
      %p59 = por %p57, %p58
      %p60 = scmp.ne.s32.totalorder %s52, %s54
      %p61 = scmp.eq.s32.totalorder %s23, 1
      %p62 = por %p60, %p61
      %p63 = scmp.ne.s32.totalorder %s54, %s55
      %p64 = scmp.eq.s32.totalorder %s23, 0
      %p65 = por %p63, %p64
      %p66 = scmp.ne.s32.totalorder %s54, %s55
      %p67 = scmp.eq.s32.totalorder %s24, 1
      %p68 = por %p66, %p67
      %p70 = scmp.ne.s32.totalorder %s55, %s69
      %p71 = scmp.eq.s32.totalorder %s24, 0
      %p72 = por %p70, %p71
      %s74 = sadd.s32 %s73, 1
      %p77 = scmp.eq.s32.totalorder %s18, 1
      %p78 = scmp.ne.s32.totalorder %s73, %s75
      %p79 = scmp.eq.s32.totalorder %s18, 0
      %p80 = por %p78, %p79
      %p81 = scmp.ne.s32.totalorder %s73, %s75
      %p82 = scmp.eq.s32.totalorder %s23, 1
      %p83 = por %p81, %p82
      %p84 = scmp.ne.s32.totalorder %s75, %s76
      %p85 = scmp.eq.s32.totalorder %s23, 0
      %p86 = por %p84, %p85
      %p87 = scmp.ne.s32.totalorder %s75, %s76
      %p88 = scmp.eq.s32.totalorder %s24, 1
      %p89 = por %p87, %p88
      %p91 = scmp.ne.s32.totalorder %s76, %s90
      %p92 = scmp.eq.s32.totalorder %s24, 0
      %p93 = por %p91, %p92
      %s95 = sadd.s32 %s94, 1
      %p98 = scmp.eq.s32.totalorder %s18, 1
      %p99 = scmp.ne.s32.totalorder %s94, %s96
      %p100 = scmp.eq.s32.totalorder %s18, 0
      %p101 = por %p99, %p100
      %p102 = scmp.ne.s32.totalorder %s94, %s96
      %p103 = scmp.eq.s32.totalorder %s23, 1
      %p104 = por %p102, %p103
      %p105 = scmp.ne.s32.totalorder %s96, %s97
      %p106 = scmp.eq.s32.totalorder %s23, 0
      %p107 = por %p105, %p106
      %p108 = scmp.ne.s32.totalorder %s96, %s97
      %p109 = scmp.eq.s32.totalorder %s24, 1
      %p110 = por %p108, %p109
      %p112 = scmp.ne.s32.totalorder %s97, %s111
      %p113 = scmp.eq.s32.totalorder %s24, 0
      %p114 = por %p112, %p113
      %s116 = sadd.s32 %s115, 1
      %p119 = scmp.eq.s32.totalorder %s18, 1
      %p120 = scmp.ne.s32.totalorder %s115, %s117
      %p121 = scmp.eq.s32.totalorder %s18, 0
      %p122 = por %p120, %p121
      %p123 = scmp.ne.s32.totalorder %s115, %s117
      %p124 = scmp.eq.s32.totalorder %s23, 1
      %p125 = por %p123, %p124
      %p126 = scmp.ne.s32.totalorder %s117, %s118
      %p127 = scmp.eq.s32.totalorder %s23, 0
      %p128 = por %p126, %p127
      %p129 = scmp.ne.s32.totalorder %s117, %s118
      %p130 = scmp.eq.s32.totalorder %s24, 1
      %p131 = por %p129, %p130
      %p133 = scmp.ne.s32.totalorder %s118, %s132
      %p134 = scmp.eq.s32.totalorder %s24, 0
      %p135 = por %p133, %p134
      %s137 = sadd.s32 %s136, 1
      %p140 = scmp.eq.s32.totalorder %s18, 1
      %p141 = scmp.ne.s32.totalorder %s136, %s138
      %p142 = scmp.eq.s32.totalorder %s18, 0
      %p143 = por %p141, %p142
      %p144 = scmp.ne.s32.totalorder %s136, %s138
      %p145 = scmp.eq.s32.totalorder %s23, 1
      %p146 = por %p144, %p145
      %p147 = scmp.ne.s32.totalorder %s138, %s139
      %p148 = scmp.eq.s32.totalorder %s23, 0
      %p149 = por %p147, %p148
      %p150 = scmp.ne.s32.totalorder %s138, %s139
      %p151 = scmp.eq.s32.totalorder %s24, 1
      %p152 = por %p150, %p151
      %p154 = scmp.ne.s32.totalorder %s139, %s153
      %p155 = scmp.eq.s32.totalorder %s24, 0
      %p156 = por %p154, %p155
      %s158 = sadd.s32 %s157, 1
      %p161 = scmp.eq.s32.totalorder %s18, 1
      %p162 = scmp.ne.s32.totalorder %s157, %s159
      %p163 = scmp.eq.s32.totalorder %s18, 0
      %p164 = por %p162, %p163
      %p165 = scmp.ne.s32.totalorder %s157, %s159
      %p166 = scmp.eq.s32.totalorder %s23, 1
      %p167 = por %p165, %p166
      %p168 = scmp.ne.s32.totalorder %s159, %s160
      %p169 = scmp.eq.s32.totalorder %s23, 0
      %p170 = por %p168, %p169
      %p171 = scmp.ne.s32.totalorder %s159, %s160
      %p172 = scmp.eq.s32.totalorder %s24, 1
      %p173 = por %p171, %p172
      %p175 = scmp.ne.s32.totalorder %s160, %s174
      %p176 = scmp.eq.s32.totalorder %s24, 0
      %p177 = por %p175, %p176
      %s179 = sadd.s32 %s178, 1
      %p182 = scmp.eq.s32.totalorder %s18, 1
      %p183 = scmp.ne.s32.totalorder %s178, %s180
      %p184 = scmp.eq.s32.totalorder %s18, 0
      %p185 = por %p183, %p184
      %p186 = scmp.ne.s32.totalorder %s178, %s180
      %p187 = scmp.eq.s32.totalorder %s23, 1
      %p188 = por %p186, %p187
      %p189 = scmp.ne.s32.totalorder %s180, %s181
      %p190 = scmp.eq.s32.totalorder %s23, 0
      %p191 = por %p189, %p190
      %p192 = scmp.ne.s32.totalorder %s180, %s181
      %p193 = scmp.eq.s32.totalorder %s24, 1
      %p194 = por %p192, %p193
      %p196 = scmp.ne.s32.totalorder %s181, %s195
      %p197 = scmp.eq.s32.totalorder %s24, 0
      %p198 = por %p196, %p197
      %s200 = sadd.s32 %s199, 1
      %p203 = scmp.eq.s32.totalorder %s18, 1
      %p204 = scmp.ne.s32.totalorder %s199, %s201
      %p205 = scmp.eq.s32.totalorder %s18, 0
      %p206 = por %p204, %p205
      %p207 = scmp.ne.s32.totalorder %s199, %s201
      %p208 = scmp.eq.s32.totalorder %s23, 1
      %p209 = por %p207, %p208
      %p210 = scmp.ne.s32.totalorder %s201, %s202
      %p211 = scmp.eq.s32.totalorder %s23, 0
      %p212 = por %p210, %p211
      %p213 = scmp.ne.s32.totalorder %s201, %s202
      %p214 = scmp.eq.s32.totalorder %s24, 1
      %p215 = por %p213, %p214
      %p217 = scmp.ne.s32.totalorder %s202, %s216
      %p218 = scmp.eq.s32.totalorder %s24, 0
      %p219 = por %p217, %p218
      %s220 = ssub.s32 %s18, %s25
      %p221 = scmp.eq.s32.totalorder %s220, 0
      %s223 = sadd.s32 %s222, 1
      %s224 = scalar_select %p221, %s222, %s223
      %p227 = pneg %p221
      %p228 = scmp.eq.s32.totalorder %s18, 1
      %p229 = por %p227, %p228
      %p230 = scmp.ne.s32.totalorder %s222, %s225
      %p231 = scmp.eq.s32.totalorder %s18, 0
      %p232 = por %p230, %p231
      %p233 = scmp.ne.s32.totalorder %s222, %s225
      %p234 = scmp.eq.s32.totalorder %s23, 1
      %p235 = por %p233, %p234
      %p236 = scmp.ne.s32.totalorder %s225, %s226
      %p237 = scmp.eq.s32.totalorder %s23, 0
      %p238 = por %p236, %p237
      %p239 = scmp.ne.s32.totalorder %s225, %s226
      %p240 = scmp.eq.s32.totalorder %s24, 1
      %p241 = por %p239, %p240
      %p243 = scmp.ne.s32.totalorder %s226, %s242
      %p244 = scmp.eq.s32.totalorder %s24, 0
      %p245 = por %p243, %p244
      %p246 = scmp.le.s32.totalorder 1, %s18
      %p247 = scmp.lt.s32.totalorder %s18, 3
      %p248 = pnand %p246, %p247
      %p249 = pneg %p248
      // Predicated region
      $region9: #{tpu_custom_call.1} parent=5 // pred_check
        _
      $region10: #{tpu_custom_call.1} parent=5 // pred_check_branch
        %251 = sbr.rel (%p248) target = $region12
      $region11: #{tpu_custom_call.1} parent=5 // pred_region
        %s252 = ssub.s32 %s18, 1
        // Predicated region
        $region13: #{tpu_custom_call.1} parent=11 // pred_check
          %p253 = pneg %p65
        $region14: #{tpu_custom_call.1} parent=11 // pred_check_branch
          %255 = sbr.rel (%p253) target = $region16
        $region15: #{tpu_custom_call.1} parent=11 // pred_region
          _
        $region16: #{tpu_custom_call.1} parent=11 // pred_fallthru
          _
        // Predicated region
        $region17: #{tpu_custom_call.1} parent=11 // pred_check
          %p256 = pneg %p86
        $region18: #{tpu_custom_call.1} parent=11 // pred_check_branch
          %258 = sbr.rel (%p256) target = $region20
        $region19: #{tpu_custom_call.1} parent=11 // pred_region
          _
        $region20: #{tpu_custom_call.1} parent=11 // pred_fallthru
          _
        // Predicated region
        $region21: #{tpu_custom_call.1} parent=11 // pred_check
          %p259 = pneg %p107
        $region22: #{tpu_custom_call.1} parent=11 // pred_check_branch
          %261 = sbr.rel (%p259) target = $region24
        $region23: #{tpu_custom_call.1} parent=11 // pred_region
          _
        $region24: #{tpu_custom_call.1} parent=11 // pred_fallthru
          _
        // Predicated region
        $region25: #{tpu_custom_call.1} parent=11 // pred_check
          %p262 = pneg %p128
        $region26: #{tpu_custom_call.1} parent=11 // pred_check_branch
          %264 = sbr.rel (%p262) target = $region28
        $region27: #{tpu_custom_call.1} parent=11 // pred_region
          _
        $region28: #{tpu_custom_call.1} parent=11 // pred_fallthru
          _
        // Predicated region
        $region29: #{tpu_custom_call.1} parent=11 // pred_check
          %p265 = pneg %p149
        $region30: #{tpu_custom_call.1} parent=11 // pred_check_branch
          %267 = sbr.rel (%p265) target = $region32
        $region31: #{tpu_custom_call.1} parent=11 // pred_region
          _
        $region32: #{tpu_custom_call.1} parent=11 // pred_fallthru
          _
        // Predicated region
        $region33: #{tpu_custom_call.1} parent=11 // pred_check
          %p268 = pneg %p170
        $region34: #{tpu_custom_call.1} parent=11 // pred_check_branch
          %270 = sbr.rel (%p268) target = $region36
        $region35: #{tpu_custom_call.1} parent=11 // pred_region
          _
        $region36: #{tpu_custom_call.1} parent=11 // pred_fallthru
          _
        // Predicated region
        $region37: #{tpu_custom_call.1} parent=11 // pred_check
          %p271 = pneg %p191
        $region38: #{tpu_custom_call.1} parent=11 // pred_check_branch
          %273 = sbr.rel (%p271) target = $region40
        $region39: #{tpu_custom_call.1} parent=11 // pred_region
          _
        $region40: #{tpu_custom_call.1} parent=11 // pred_fallthru
          _
        // Predicated region
        $region41: #{tpu_custom_call.1} parent=11 // pred_check
          %p274 = pneg %p212
        $region42: #{tpu_custom_call.1} parent=11 // pred_check_branch
          %276 = sbr.rel (%p274) target = $region44
        $region43: #{tpu_custom_call.1} parent=11 // pred_region
          _
        $region44: #{tpu_custom_call.1} parent=11 // pred_fallthru
          _
      $region12: #{tpu_custom_call.1} parent=5 // pred_fallthru
        _
      %p277 = scmp.lt.s32.totalorder %s18, 2
      // Predicated region
      $region45: #{tpu_custom_call.1} parent=5 // pred_check
        %p278 = pneg %p277
      $region46: #{tpu_custom_call.1} parent=5 // pred_check_branch
        %280 = sbr.rel (%p278) target = $region48
      $region47: #{tpu_custom_call.1} parent=5 // pred_region
        // Predicated region
        $region49: #{tpu_custom_call.1} parent=47 // pred_check
          %p281 = pneg %p38
        $region50: #{tpu_custom_call.1} parent=47 // pred_check_branch
          %283 = sbr.rel (%p281) target = $region52
        $region51: #{tpu_custom_call.1} parent=47 // pred_region
          %s284 = smul.u32 2, %s18
          %p285 = scmp.lt.s32.totalorder %s284, 3
          %s286 = scalar_select %p285, %s284, 3
          %s287 = smul.addr %s286, 8
          %s288 = scalar_lea.vmem %s0, %s287
          %s289 = smul.u32 2, %s18
        $region52: #{tpu_custom_call.1} parent=47 // pred_fallthru
          _
      $region48: #{tpu_custom_call.1} parent=5 // pred_fallthru
        _
      %p290 = scmp.le.s32.totalorder 1, %s18
      %p291 = scmp.lt.s32.totalorder %s18, 3
      %p292 = pnand %p290, %p291
      %p293 = pneg %p292
      // Predicated region
      $region53: #{tpu_custom_call.1} parent=5 // pred_check
        _
      $region54: #{tpu_custom_call.1} parent=5 // pred_check_branch
        %295 = sbr.rel (%p292) target = $region56
      $region55: #{tpu_custom_call.1} parent=5 // pred_region
        %s296 = ssub.s32 %s18, 1
        %s297 = smul.u32 2, %s23
        %p298 = scmp.lt.s32.totalorder %s297, 3
        %s299 = scalar_select %p298, %s297, 3
        %s300 = smul.addr %s299, 8
        %s301 = scalar_lea.vmem %s0, %s300
        %p302 = pneg %p44
        %p303 = pneg %p41
        %p304 = pneg %p65
        %p305 = pneg %p62
        %p306 = pneg %p86
        %p307 = pneg %p83
        %p308 = pneg %p107
        %p309 = pneg %p104
        %p310 = pneg %p128
        %p311 = pneg %p125
        %p312 = pneg %p149
        %p313 = pneg %p146
        %p314 = pneg %p170
        %p315 = pneg %p167
        %p316 = pneg %p191
        %p317 = pneg %p188
        %p318 = pneg %p212
        %p319 = pneg %p209
        %p320 = pneg %p238
        %p321 = pneg %p235
        %s322 = sand.u32 %s225, 1
        %s323 = scalar_lea.sflag [#allocation3], %s322
        %s324 = sand.u32 %s225, 1
        %s325 = smul.addr %s324, 16
        %s326 = scalar_lea.vmem [#allocation2], %s325
        %s327 = smul.u32 2, %s23
        %p328 = scmp.lt.s32.totalorder %s327, 3
        %s329 = scalar_select %p328, %s327, 3
        %s330 = smul.addr %s329, 8
        %s331 = scalar_lea.vmem %s0, %s330
        %s332 = smul.u32 2, %s23
        %s333 = smul.u32 2, %s23
        %v334 = vld [vmem:[%s331] sm:$0xff]
        %v335 = vld [vmem:[%s331 + $0x8] sm:$0xff]
        %v336 = vld [vmem:[%s1] sm:$0xff]
        %v337 = vld [vmem:[%s1 + $0x8] sm:$0xff]
        %v338 = vld [vmem:[%s1 + $0x10] sm:$0xff]
        %v339 = vld [vmem:[%s1 + $0x18] sm:$0xff]
        %v340 = vld [vmem:[%s1 + $0x20] sm:$0xff]
        %v341 = vld [vmem:[%s1 + $0x28] sm:$0xff]
        %v342 = vld [vmem:[%s1 + $0x30] sm:$0xff]
        %v343 = vld [vmem:[%s1 + $0x38] sm:$0xff]
        %v344 = vld [vmem:[%s1 + $0x40] sm:$0xff]
        %v345 = vld [vmem:[%s1 + $0x48] sm:$0xff]
        %v346 = vld [vmem:[%s1 + $0x50] sm:$0xff]
        %v347 = vld [vmem:[%s1 + $0x58] sm:$0xff]
        %v348 = vld [vmem:[%s1 + $0x60] sm:$0xf]
        %v349 = vld [vmem:[%s2] sm:$0x1]
        %v351 = vperm.slane %v349, 0
        %vm353 = vcmask 818176
        %v355 = vsel %vm353, %v334, 0
        %v358 = vsel %vm353, %v335, 0
        %vm360 = vcmask 1043456
        %v362 = vsel %vm360, %v348, 0
        %364 = vmatpush.msra.mxu0 0.0
        %365 = vmatpush.msra.mxu0 0.0
        %366 = vmatpush.msra.mxu0 0.0
        %367 = vmatpush.msra.mxu0 %v362
        %368 = vmatpush.msra.mxu0 %v347
        %369 = vmatpush.msra.mxu0 %v346
        %370 = vmatpush.msra.mxu0 %v345
        %371 = vmatpush.msra.mxu0 %v344
        %372 = vmatpush.msra.mxu0 %v343
        %373 = vmatpush.msra.mxu0 %v342
        %374 = vmatpush.msra.mxu0 %v341
        %375 = vmatpush.msra.mxu0 %v340
        %376 = vmatpush.msra.mxu0 %v339
        %377 = vmatpush.msra.mxu0 %v338
        %378 = vmatpush.msra.mxu0 %v337
        %379 = vmatpush.msra.mxu0 %v336
        %380 = vmatmul.f32.gmra.mxu0 %v355
        %v381 = vpop.f32.mrf.mxu0
        %v382 = vadd.f32 %v351, %v381
        %383 = vmatmul.f32.gmra.mxu0 %v358
        %v384 = vpop.f32.mrf.mxu0
        %v385 = vadd.f32 %v351, %v384
        %386 = vdwg.mxu0
        %v387 = vxor.u32 %v382, 2147483648
        %v388 = vxor.u32 %v385, 2147483648
        %v389 = vmul.f32 %v387, 1.442695
        %v390 = vpow.pop %v389
        %v391 = vmul.f32 %v388, 1.442695
        %v392 = vpow.pop %v391
        %v393 = vadd.f32 %v390, 1.0
        %v394 = vadd.f32 %v392, 1.0
        %v395 = vrcp.pop %v393
        %v396 = vmul.f32 %v393, %v395
        %v397 = vsub.f32 1.0, %v396
        %v398 = vmul.f32 %v395, %v397
        %v399 = vadd.f32 %v395, %v398
        %vm400 = vweird.f32 %v393
        %vm401 = vweird.f32 %v395
        %vm402 = vmor %vm400, %vm401
        %v403 = vsel %vm402, %v395, %v399
        %v404 = vand.u32 2147483647, %v393
        %vm405 = vcmp.eq.f32.partialorder %v404, 8.507059e+37
        %v406 = vand.u32 %v393, 2147483648
        %v407 = vor.u32 1.1754944e-38, %v406
        %v408 = vsel %vm405, %v407, %v403
        %v409 = vmul.f32 1.0, %v408
        %v410 = vrcp.pop %v394
        %v411 = vmul.f32 %v394, %v410
        %v412 = vsub.f32 1.0, %v411
        %v413 = vmul.f32 %v410, %v412
        %v414 = vadd.f32 %v410, %v413
        %vm415 = vweird.f32 %v394
        %vm416 = vweird.f32 %v410
        %vm417 = vmor %vm415, %vm416
        %v418 = vsel %vm417, %v410, %v414
        %v419 = vand.u32 2147483647, %v394
        %vm420 = vcmp.eq.f32.partialorder %v419, 8.507059e+37
        %v421 = vand.u32 %v394, 2147483648
        %v422 = vor.u32 1.1754944e-38, %v421
        %v423 = vsel %vm420, %v422, %v418
        %v424 = vmul.f32 1.0, %v423
        %v425 = vld [vmem:[%s3] sm:$0xff]
        %v426 = vld [vmem:[%s3 + $0x8] sm:$0xff]
        %v427 = vld [vmem:[%s3 + $0x10] sm:$0xf]
        %v428 = vld [vmem:[%s4] sm:$0x1]
        %v430 = vperm.slane %v428, 0
        %vm432 = vcmask 162816
        %v434 = vsel %vm432, %v409, 0
        %v437 = vsel %vm432, %v424, 0
        %v440 = vsel %vm360, %v427, 0
        %442 = vmatpush.msra.mxu0 0.0
        %443 = vmatpush.msra.mxu0 0.0
        %444 = vmatpush.msra.mxu0 0.0
        %445 = vmatpush.msra.mxu0 0.0
        %446 = vmatpush.msra.mxu0 0.0
        %447 = vmatpush.msra.mxu0 0.0
        %448 = vmatpush.msra.mxu0 0.0
        %449 = vmatpush.msra.mxu0 0.0
        %450 = vmatpush.msra.mxu0 0.0
        %451 = vmatpush.msra.mxu0 0.0
        %452 = vmatpush.msra.mxu0 0.0
        %453 = vmatpush.msra.mxu0 0.0
        %454 = vmatpush.msra.mxu0 0.0
        %455 = vmatpush.msra.mxu0 %v440
        %456 = vmatpush.msra.mxu0 %v426
        %457 = vmatpush.msra.mxu0 %v425
        %458 = vmatmul.f32.gmra.mxu0 %v434
        %v459 = vpop.f32.mrf.mxu0
        %v460 = vadd.f32 %v430, %v459
        %461 = vmatmul.f32.gmra.mxu0 %v437
        %v462 = vpop.f32.mrf.mxu0
        %v463 = vadd.f32 %v430, %v462
        %464 = vdwg.mxu0
        %v465 = vxor.u32 %v460, 2147483648
        %v466 = vxor.u32 %v463, 2147483648
        %v467 = vmul.f32 %v465, 1.442695
        %v468 = vpow.pop %v467
        %v469 = vmul.f32 %v466, 1.442695
        %v470 = vpow.pop %v469
        %v471 = vadd.f32 %v468, 1.0
        %v472 = vadd.f32 %v470, 1.0
        %v473 = vrcp.pop %v471
        %v474 = vmul.f32 %v471, %v473
        %v475 = vsub.f32 1.0, %v474
        %v476 = vmul.f32 %v473, %v475
        %v477 = vadd.f32 %v473, %v476
        %vm478 = vweird.f32 %v471
        %vm479 = vweird.f32 %v473
        %vm480 = vmor %vm478, %vm479
        %v481 = vsel %vm480, %v473, %v477
        %v482 = vand.u32 2147483647, %v471
        %vm483 = vcmp.eq.f32.partialorder %v482, 8.507059e+37
        %v484 = vand.u32 %v471, 2147483648
        %v485 = vor.u32 1.1754944e-38, %v484
        %v486 = vsel %vm483, %v485, %v481
        %v487 = vmul.f32 1.0, %v486
        %v488 = vrcp.pop %v472
        %v489 = vmul.f32 %v472, %v488
        %v490 = vsub.f32 1.0, %v489
        %v491 = vmul.f32 %v488, %v490
        %v492 = vadd.f32 %v488, %v491
        %vm493 = vweird.f32 %v472
        %vm494 = vweird.f32 %v488
        %vm495 = vmor %vm493, %vm494
        %v496 = vsel %vm495, %v488, %v492
        %v497 = vand.u32 2147483647, %v472
        %vm498 = vcmp.eq.f32.partialorder %v497, 8.507059e+37
        %v499 = vand.u32 %v472, 2147483648
        %v500 = vor.u32 1.1754944e-38, %v499
        %v501 = vsel %vm498, %v500, %v496
        %v502 = vmul.f32 1.0, %v501
        %v503 = vld [vmem:[%s5] sm:$0xff]
        %v504 = vld [vmem:[%s5 + $0x8] sm:$0x3]
        %v505 = vld [vmem:[%s6] sm:$0x1]
        %v507 = vperm.slane %v505, 0
        %vm509 = vcmask 80896
        %v511 = vsel %vm509, %v487, 0
        %v514 = vsel %vm509, %v502, 0
        %vm516 = vcmask 1041408
        %v518 = vsel %vm516, %v504, 0
        %520 = vmatpush.msra.mxu0 0.0
        %521 = vmatpush.msra.mxu0 0.0
        %522 = vmatpush.msra.mxu0 0.0
        %523 = vmatpush.msra.mxu0 0.0
        %524 = vmatpush.msra.mxu0 0.0
        %525 = vmatpush.msra.mxu0 0.0
        %526 = vmatpush.msra.mxu0 0.0
        %527 = vmatpush.msra.mxu0 0.0
        %528 = vmatpush.msra.mxu0 0.0
        %529 = vmatpush.msra.mxu0 0.0
        %530 = vmatpush.msra.mxu0 0.0
        %531 = vmatpush.msra.mxu0 0.0
        %532 = vmatpush.msra.mxu0 0.0
        %533 = vmatpush.msra.mxu0 0.0
        %534 = vmatpush.msra.mxu0 %v518
        %535 = vmatpush.msra.mxu0 %v503
        %536 = vmatmul.f32.gmra.mxu0 %v511
        %v537 = vpop.f32.mrf.mxu0
        %v538 = vadd.f32 %v507, %v537
        %539 = vmatmul.f32.gmra.mxu0 %v514
        %v540 = vpop.f32.mrf.mxu0
        %v541 = vadd.f32 %v507, %v540
        %542 = vdwg.mxu0
        %v543 = vxor.u32 %v538, 2147483648
        %v544 = vxor.u32 %v541, 2147483648
        %v545 = vmul.f32 %v543, 1.442695
        %v546 = vpow.pop %v545
        %v547 = vmul.f32 %v544, 1.442695
        %v548 = vpow.pop %v547
        %v549 = vadd.f32 %v546, 1.0
        %v550 = vadd.f32 %v548, 1.0
        %v551 = vrcp.pop %v549
        %v552 = vmul.f32 %v549, %v551
        %v553 = vsub.f32 1.0, %v552
        %v554 = vmul.f32 %v551, %v553
        %v555 = vadd.f32 %v551, %v554
        %vm556 = vweird.f32 %v549
        %vm557 = vweird.f32 %v551
        %vm558 = vmor %vm556, %vm557
        %v559 = vsel %vm558, %v551, %v555
        %v560 = vand.u32 2147483647, %v549
        %vm561 = vcmp.eq.f32.partialorder %v560, 8.507059e+37
        %v562 = vand.u32 %v549, 2147483648
        %v563 = vor.u32 1.1754944e-38, %v562
        %v564 = vsel %vm561, %v563, %v559
        %v565 = vmul.f32 1.0, %v564
        %v566 = vrcp.pop %v550
        %v567 = vmul.f32 %v550, %v566
        %v568 = vsub.f32 1.0, %v567
        %v569 = vmul.f32 %v566, %v568
        %v570 = vadd.f32 %v566, %v569
        %vm571 = vweird.f32 %v550
        %vm572 = vweird.f32 %v566
        %vm573 = vmor %vm571, %vm572
        %v574 = vsel %vm573, %v566, %v570
        %v575 = vand.u32 2147483647, %v550
        %vm576 = vcmp.eq.f32.partialorder %v575, 8.507059e+37
        %v577 = vand.u32 %v550, 2147483648
        %v578 = vor.u32 1.1754944e-38, %v577
        %v579 = vsel %vm576, %v578, %v574
        %v580 = vmul.f32 1.0, %v579
        %v581 = vld [vmem:[%s7] sm:$0xff]
        %v582 = vld [vmem:[%s7 + $0x8] sm:$0xff]
        %v583 = vld [vmem:[%s7 + $0x10] sm:$0xf]
        %v584 = vld [vmem:[%s8] sm:$0x1]
        %v586 = vperm.slane %v584, 0
        %v589 = vsel %vm432, %v565, 0
        %v592 = vsel %vm432, %v580, 0
        %v595 = vsel %vm360, %v583, 0
        %597 = vmatpush.msra.mxu0 0.0
        %598 = vmatpush.msra.mxu0 0.0
        %599 = vmatpush.msra.mxu0 0.0
        %600 = vmatpush.msra.mxu0 0.0
        %601 = vmatpush.msra.mxu0 0.0
        %602 = vmatpush.msra.mxu0 0.0
        %603 = vmatpush.msra.mxu0 0.0
        %604 = vmatpush.msra.mxu0 0.0
        %605 = vmatpush.msra.mxu0 0.0
        %606 = vmatpush.msra.mxu0 0.0
        %607 = vmatpush.msra.mxu0 0.0
        %608 = vmatpush.msra.mxu0 0.0
        %609 = vmatpush.msra.mxu0 0.0
        %610 = vmatpush.msra.mxu0 %v595
        %611 = vmatpush.msra.mxu0 %v582
        %612 = vmatpush.msra.mxu0 %v581
        %613 = vmatmul.f32.gmra.mxu0 %v589
        %v614 = vpop.f32.mrf.mxu0
        %v615 = vadd.f32 %v586, %v614
        %616 = vmatmul.f32.gmra.mxu0 %v592
        %v617 = vpop.f32.mrf.mxu0
        %v618 = vadd.f32 %v586, %v617
        %619 = vdwg.mxu0
        %620 = vst.msk [vmem:[%s326] sm:$0xff] %vm353, %v615
        %621 = vst.msk [vmem:[%s326 + $0x8] sm:$0xff] %vm353, %v618
        %s622 = sand.u32 %s225, 1
        %s623 = scalar_lea.sflag [#allocation3], %s622
        %s624 = sand.u32 %s225, 1
        %s625 = smul.addr %s624, 16
        %s626 = scalar_lea.vmem [#allocation2], %s625
        // Predicated region
        $region57: #{tpu_custom_call.1} parent=55 // pred_check
          %p627 = pneg %p235
        $region58: #{tpu_custom_call.1} parent=55 // pred_check_branch
          %629 = sbr.rel (%p627) target = $region60
        $region59: #{tpu_custom_call.1} parent=55 // pred_region
          %s630 = smul.u32 2, %s23
          %632 = vsyncadd %s623, 0
          %s633 = smul.addr %s630, 8
          %s634 = scalar_lea.hbm %s9, %s633
          %s635 = sshll.u32 %s626, 4
          %s636 = int_to_ptr.vmem [resolvable:$true] %s635
          %s637 = sshll.u32 %s634, 4
          %s638 = int_to_ptr.hbm [resolvable:$true] %s637
          %643 = dma.vmem_to_hbm [thread:$0]  %s636, 256, %s638, %s623, 128, 128, 8
        $region60: #{tpu_custom_call.1} parent=55 // pred_fallthru
          _
      $region56: #{tpu_custom_call.1} parent=5 // pred_fallthru
        _
      %p644 = scmp.le.s32.totalorder 2, %s18
      // Predicated region
      $region61: #{tpu_custom_call.1} parent=5 // pred_check
        %p645 = pneg %p644
      $region62: #{tpu_custom_call.1} parent=5 // pred_check_branch
        %647 = sbr.rel (%p645) target = $region64
      $region63: #{tpu_custom_call.1} parent=5 // pred_region
        %s648 = ssub.s32 %s18, 2
        // Predicated region
        $region65: #{tpu_custom_call.1} parent=63 // pred_check
          %p649 = pneg %p241
        $region66: #{tpu_custom_call.1} parent=63 // pred_check_branch
          %651 = sbr.rel (%p649) target = $region68
        $region67: #{tpu_custom_call.1} parent=63 // pred_region
          %s652 = sand.u32 %s226, 1
          %s653 = scalar_lea.sflag [#allocation3], %s652
          %s654 = sand.u32 %s226, 1
          %s655 = smul.addr %s654, 16
          %s656 = scalar_lea.vmem [#allocation2], %s655
          %658 = dma.done %s653, 256
        $region68: #{tpu_custom_call.1} parent=63 // pred_fallthru
          _
      $region64: #{tpu_custom_call.1} parent=5 // pred_fallthru
        _
    $region6: #{tpu_custom_call.1} parent=1 // loop_footer
      %s22 = sadd.s32 1, %s18
    $region7: #{tpu_custom_call.1} parent=1 // loop_footer_branch
      %17 = sbr.rel target = $region3
    $region8: #{tpu_custom_call.1} parent=1 // loop_exit
      _
    %659 = vsyncpa [#allocation3], 1
    %s660 = scalar_lea.sflag [#allocation3], 1
    %661 = vsyncpa %s660, 1

</llo_original>
